<compile_context>
chip_gen: v7x
topology: tpu7x:2x2x1
jax: 0.10.0
libtpu: 0.0.40
codegen_flags: <defaults>
</compile_context>

<pallas_src>
import math
import functools

import numpy as np
import jax
import jax.numpy as jnp
from jax.experimental import pallas as pl
from jax.experimental.pallas import tpu as pltpu


def _pos_emb_kernel(inv_ref, phase_ref, y_ref, x_ref, out_ref, *, f):
    """One (batch, spatial-tile) block, channel-major / spatial-minor (lane-dense).

    inv_ref:   (F, 1)   f32  -- 1 / temperature**(2*floor(c/2)/F) per channel c
    phase_ref: (F, 1)   f32  -- 0 for even channels, pi/2 for odd (cos(a)=sin(a+pi/2))
    y_ref:     (1, 1, TS) f32 -- y_embed for this spatial tile (flattened H*W)
    x_ref:     (1, 1, TS) f32 -- x_embed for this spatial tile
    out_ref:   (1, 2F, TS)    -- output tile; channel order is [pos_y | pos_x]
    """
    inv = inv_ref[...]      # (F, 1)
    phase = phase_ref[...]  # (F, 1)
    y = y_ref[0]            # (1, TS)
    x = x_ref[0]            # (1, TS)
    # One FMA + one sin per output element; the interleaved sin/cos channel pattern
    # comes from the baked per-channel phase (dim_t[2k] == dim_t[2k+1]).
    out_ref[0, :f, :] = jnp.sin(y * inv + phase).astype(out_ref.dtype)
    out_ref[0, f:, :] = jnp.sin(x * inv + phase).astype(out_ref.dtype)


def _choose_spatial_tile(hw_pad, two_f, batch, target_bytes=4 << 20):
    """Largest multiple-of-128 tile dividing hw_pad with ~target_bytes output tile.

    When batch == 1, prefer >= 2 spatial tiles so both v7x TensorCores get work.
    """
    m = hw_pad // 128                                   # hw_pad is a multiple of 128
    max_units = max(1, target_bytes // (two_f * 4 * 128))
    units = 1
    for d in range(1, m + 1):
        if m % d == 0 and d <= max_units:
            units = d
    if batch == 1 and m // units == 1 and m % 2 == 0:
        units = m // 2                                   # ensure >= 2 grid points (v7x)
    return units * 128


def position_embedding_sine(x, mask, *, num_pos_feats=64, temperature=10000,
                            normalize=False, scale=None, spatial_tile=None,
                            out_dtype=jnp.float32):
    """Pallas implementation of PositionEmbeddingSine.forward.

    x:    (B, C, H, W)  NCHW (only used for shape consistency, like PyTorch)
    mask: (B, H, W)     bool
    returns pos: (B, 2*num_pos_feats, H, W) in `out_dtype` (NCHW, matches PyTorch)
    """
    assert mask is not None
    if scale is not None and normalize is False:
        raise ValueError("normalize should be True if scale is passed")
    if scale is None:
        scale = 2 * math.pi

    f = int(num_pos_feats)
    assert f % 2 == 0, "num_pos_feats must be even (paired sin/cos channels)"

    B, H, W = mask.shape
    assert x.shape[0] == B and x.shape[2] == H and x.shape[3] == W

    # --- tiny prologue in plain XLA: cumsums + optional normalization ---------
    not_mask = jnp.logical_not(mask).astype(jnp.float32)
    y_embed = jnp.cumsum(not_mask, axis=1)
    x_embed = jnp.cumsum(not_mask, axis=2)
    if normalize:
        eps = 1e-6
        y_embed = y_embed / (y_embed[:, -1:, :] + eps) * scale
        x_embed = x_embed / (x_embed[:, :, -1:] + eps) * scale

    # --- flatten spatial so the kernel's minor (lane) dim is 128-dense ---------
    hw = H * W
    hw_pad = pl.cdiv(hw, 128) * 128
    y_flat = y_embed.reshape(B, 1, hw)
    x_flat = x_embed.reshape(B, 1, hw)
    if hw_pad != hw:
        pad = ((0, 0), (0, 0), (0, hw_pad - hw))
        y_flat = jnp.pad(y_flat, pad)
        x_flat = jnp.pad(x_flat, pad)

    if spatial_tile is None:
        ts = _choose_spatial_tile(hw_pad, 2 * f, B)
    else:
        ts = int(spatial_tile)
        if ts != hw_pad and (ts % 128 != 0 or hw_pad % ts != 0):
            raise ValueError(
                "spatial_tile must be a multiple of 128 dividing the padded spatial "
                f"extent {hw_pad} (or equal to it); got {ts}")
    n_tiles = hw_pad // ts

    # Per-channel constants, passed as real kernel inputs (Pallas forbids captured
    # array constants).  dim_t[2k] == dim_t[2k+1] == temperature ** (2k / F).
    c = np.arange(f, dtype=np.float64)
    inv_full = (1.0 / np.power(float(temperature), 2.0 * np.floor(c / 2) / f))
    inv_full = jnp.asarray(inv_full.astype(np.float32)).reshape(f, 1)
    phase = jnp.asarray(((c % 2) * (np.pi / 2)).astype(np.float32)).reshape(f, 1)

    kernel = functools.partial(_pos_emb_kernel, f=f)

    out = pl.pallas_call(
        kernel,
        out_shape=jax.ShapeDtypeStruct((B, 2 * f, hw_pad), out_dtype),
        grid=(B, n_tiles),
        in_specs=[
            pl.BlockSpec((f, 1), lambda b, s: (0, 0)),        # inv_full (revisited)
            pl.BlockSpec((f, 1), lambda b, s: (0, 0)),        # phase    (revisited)
            pl.BlockSpec((1, 1, ts), lambda b, s: (b, 0, s)),  # y_embed tile
            pl.BlockSpec((1, 1, ts), lambda b, s: (b, 0, s)),  # x_embed tile
        ],
        out_specs=pl.BlockSpec((1, 2 * f, ts), lambda b, s: (b, 0, s)),
        compiler_params=pltpu.CompilerParams(
            dimension_semantics=("parallel", "parallel"),
            vmem_limit_bytes=32 * 1024 * 1024,
        ),
    )(inv_full, phase, y_flat, x_flat)

    if hw_pad != hw:
        out = out[:, :, :hw]
    # Contiguous reshape back to NCHW — no transpose, no extra HBM round trip.
    return out.reshape(B, 2 * f, H, W)


def _reference(mask, *, num_pos_feats, temperature, normalize, scale):
    """Pure-JAX transcription of the PyTorch forward for correctness check."""
    not_mask = (~mask).astype(jnp.float32)
    y_embed = jnp.cumsum(not_mask, axis=1)
    x_embed = jnp.cumsum(not_mask, axis=2)
    if normalize:
        eps = 1e-6
        y_embed = y_embed / (y_embed[:, -1:, :] + eps) * scale
        x_embed = x_embed / (x_embed[:, :, -1:] + eps) * scale
    dim_t = jnp.arange(num_pos_feats, dtype=jnp.float32)
    dim_t = temperature ** (2 * jnp.floor(dim_t / 2) / num_pos_feats)
    pos_x = x_embed[..., None] / dim_t
    pos_y = y_embed[..., None] / dim_t
    B, H, W = mask.shape
    pos_x = jnp.stack(
        [jnp.sin(pos_x[..., 0::2]), jnp.cos(pos_x[..., 1::2])], axis=4
    ).reshape(B, H, W, -1)
    pos_y = jnp.stack(
        [jnp.sin(pos_y[..., 0::2]), jnp.cos(pos_y[..., 1::2])], axis=4
    ).reshape(B, H, W, -1)
    pos = jnp.concatenate([pos_y, pos_x], axis=3).transpose(0, 3, 1, 2)
    return pos


if __name__ == "__main__":
    key = jax.random.PRNGKey(0)
    kx, km, km2, km3 = jax.random.split(key, 4)

    B, C, H, W = 2, 4, 16, 16
    num_pos_feats = 16            # output channels = 32; H*W = 256 = 2 lane-rows

    x = jax.random.normal(kx, (B, C, H, W), dtype=jnp.float32)
    mask = jax.random.bernoulli(km, p=0.3, shape=(B, H, W))   # bool padding mask

    # case 1/2: default tiling, normalize False / True
    for normalize, scale in ((False, None), (True, None)):
        pos = position_embedding_sine(
            x, mask, num_pos_feats=num_pos_feats, temperature=10000,
            normalize=normalize, scale=scale)
        pos = jax.block_until_ready(pos)
        ref = _reference(mask, num_pos_feats=num_pos_feats, temperature=10000,
                         normalize=normalize,
                         scale=(2 * math.pi if scale is None else scale))
        assert pos.shape == (B, 2 * num_pos_feats, H, W), pos.shape
        err = float(jnp.max(jnp.abs(pos - ref)))
        assert err < 2e-5, f"mismatch (normalize={normalize}): max_abs_err={err}"

    # case 3: multi-tile spatial grid (spatial_tile=128) with B=1 (megacore path)
    B2, H2, W2 = 1, 24, 16                      # H*W = 384 -> 3 spatial tiles of 128
    x2 = jax.random.normal(kx, (B2, C, H2, W2), dtype=jnp.float32)
    mask2 = jax.random.bernoulli(km2, p=0.3, shape=(B2, H2, W2))
    pos2 = jax.block_until_ready(position_embedding_sine(
        x2, mask2, num_pos_feats=num_pos_feats, temperature=10000,
        normalize=True, spatial_tile=128))
    ref2 = _reference(mask2, num_pos_feats=num_pos_feats, temperature=10000,
                      normalize=True, scale=2 * math.pi)
    err2 = float(jnp.max(jnp.abs(pos2 - ref2)))
    assert err2 < 2e-5, f"tiled-path mismatch: max_abs_err={err2}"

    # case 4: ragged spatial extent (H*W = 120 -> padded to 128 inside the wrapper)
    B3, H3, W3 = 2, 10, 12
    x3 = jax.random.normal(kx, (B3, C, H3, W3), dtype=jnp.float32)
    mask3 = jax.random.bernoulli(km3, p=0.3, shape=(B3, H3, W3))
    pos3 = jax.block_until_ready(position_embedding_sine(
        x3, mask3, num_pos_feats=num_pos_feats, temperature=10000, normalize=True))
    ref3 = _reference(mask3, num_pos_feats=num_pos_feats, temperature=10000,
                      normalize=True, scale=2 * math.pi)
    err3 = float(jnp.max(jnp.abs(pos3 - ref3)))
    assert pos3.shape == (B3, 2 * num_pos_feats, H3, W3), pos3.shape
    assert err3 < 2e-5, f"padded-path mismatch: max_abs_err={err3}"

    # case 5: bf16 output option (compute f32, cast on store) — halves HBM writes
    pos_bf = jax.block_until_ready(position_embedding_sine(
        x, mask, num_pos_feats=num_pos_feats, temperature=10000,
        normalize=True, out_dtype=jnp.bfloat16))
    ref_bf = _reference(mask, num_pos_feats=num_pos_feats, temperature=10000,
                        normalize=True, scale=2 * math.pi)
    assert pos_bf.dtype == jnp.bfloat16
    err_bf = float(jnp.max(jnp.abs(pos_bf.astype(jnp.float32) - ref_bf)))
    assert err_bf < 1e-2, f"bf16-path mismatch: max_abs_err={err_bf}"

    print("KERNEL_OK")
</pallas_src>

<mosaic_0001>
module attributes {stable_mosaic.version = 11 : i64} {
  func.func @_pos_emb_kernel(%arg0: i32, %arg1: i32, %arg2: memref<16x1xf32, #tpu.memory_space<vmem>>, %arg3: memref<16x1xf32, #tpu.memory_space<vmem>>, %arg4: memref<1x1x256xf32, #tpu.memory_space<vmem>>, %arg5: memref<1x1x256xf32, #tpu.memory_space<vmem>>, %arg6: memref<1x32x256xf32, #tpu.memory_space<vmem>>) attributes {dimension_semantics = [#tpu.dimension_semantics<parallel>, #tpu.dimension_semantics<parallel>], iteration_bounds = array<i64: 2, 1>, scalar_prefetch = 0 : i64, scratch_operands = 0 : i64, tpu.core_type = #tpu.core_type<tc>, window_params = [{pipeline_mode = #tpu.pipeline_mode<synchronous>, transform_indices = @transform_0, window_bounds = array<i64: 16, 1>}, {pipeline_mode = #tpu.pipeline_mode<synchronous>, transform_indices = @transform_1, window_bounds = array<i64: 16, 1>}, {transform_indices = @transform_2, window_bounds = array<i64: 1, 1, 256>}, {transform_indices = @transform_3, window_bounds = array<i64: 1, 1, 256>}, {transform_indices = @transform_4, window_bounds = array<i64: 1, 32, 256>}]} {
    %c0 = arith.constant 0 : index
    %c0_0 = arith.constant 0 : index
    %0 = vector.load %arg2[%c0, %c0_0] : memref<16x1xf32, #tpu.memory_space<vmem>>, vector<16x1xf32>
    %c0_1 = arith.constant 0 : index
    %c0_2 = arith.constant 0 : index
    %1 = vector.load %arg3[%c0_1, %c0_2] : memref<16x1xf32, #tpu.memory_space<vmem>>, vector<16x1xf32>
    %c0_3 = arith.constant 0 : index
    %c0_4 = arith.constant 0 : index
    %c0_5 = arith.constant 0 : index
    %2 = vector.load %arg4[%c0_3, %c0_4, %c0_5] : memref<1x1x256xf32, #tpu.memory_space<vmem>>, vector<1x1x256xf32>
    %3 = vector.shape_cast %2 : vector<1x1x256xf32> to vector<1x256xf32>
    %c0_6 = arith.constant 0 : index
    %c0_7 = arith.constant 0 : index
    %c0_8 = arith.constant 0 : index
    %4 = vector.load %arg5[%c0_6, %c0_7, %c0_8] : memref<1x1x256xf32, #tpu.memory_space<vmem>>, vector<1x1x256xf32>
    %5 = vector.shape_cast %4 : vector<1x1x256xf32> to vector<1x256xf32>
    %6 = vector.broadcast %3 : vector<1x256xf32> to vector<16x256xf32>
    %7 = vector.broadcast %0 : vector<16x1xf32> to vector<16x256xf32>
    %8 = arith.mulf %6, %7 : vector<16x256xf32>
    %9 = vector.broadcast %1 : vector<16x1xf32> to vector<16x256xf32>
    %10 = arith.addf %8, %9 : vector<16x256xf32>
    %11 = math.sin %10 : vector<16x256xf32>
    %c0_9 = arith.constant 0 : index
    %c0_10 = arith.constant 0 : index
    %c0_11 = arith.constant 0 : index
    %12 = vector.load %arg6[%c0_9, %c0_10, %c0_11] : memref<1x32x256xf32, #tpu.memory_space<vmem>>, vector<1x16x256xf32>
    %13 = vector.shape_cast %12 : vector<1x16x256xf32> to vector<16x256xf32>
    %14 = vector.shape_cast %11 : vector<16x256xf32> to vector<1x16x256xf32>
    tpu.vector_store %arg6[%c0_9, %c0_10, %c0_11], %14 {strides = array<i32>} : memref<1x32x256xf32, #tpu.memory_space<vmem>>, vector<1x16x256xf32>,
    %15 = vector.broadcast %5 : vector<1x256xf32> to vector<16x256xf32>
    %16 = vector.broadcast %0 : vector<16x1xf32> to vector<16x256xf32>
    %17 = arith.mulf %15, %16 : vector<16x256xf32>
    %18 = vector.broadcast %1 : vector<16x1xf32> to vector<16x256xf32>
    %19 = arith.addf %17, %18 : vector<16x256xf32>
    %20 = math.sin %19 : vector<16x256xf32>
    %c0_12 = arith.constant 0 : index
    %c16 = arith.constant 16 : index
    %c0_13 = arith.constant 0 : index
    %21 = vector.load %arg6[%c0_12, %c16, %c0_13] : memref<1x32x256xf32, #tpu.memory_space<vmem>>, vector<1x16x256xf32>
    %22 = vector.shape_cast %21 : vector<1x16x256xf32> to vector<16x256xf32>
    %23 = vector.shape_cast %20 : vector<16x256xf32> to vector<1x16x256xf32>
    tpu.vector_store %arg6[%c0_12, %c16, %c0_13], %23 {strides = array<i32>} : memref<1x32x256xf32, #tpu.memory_space<vmem>>, vector<1x16x256xf32>,
    return
  }
  func.func @transform_0(%arg0: i32, %arg1: i32) -> (i32, i32) {
    %c0_i32 = arith.constant 0 : i32
    %c0_i32_0 = arith.constant 0 : i32
    %c0_i32_1 = arith.constant 0 : i32
    return %c0_i32, %c0_i32_0 : i32, i32
  }
  func.func @transform_1(%arg0: i32, %arg1: i32) -> (i32, i32) {
    %c0_i32 = arith.constant 0 : i32
    %c0_i32_0 = arith.constant 0 : i32
    %c0_i32_1 = arith.constant 0 : i32
    return %c0_i32, %c0_i32_0 : i32, i32
  }
  func.func @transform_2(%arg0: i32, %arg1: i32) -> (i32, i32, i32) {
    %c0_i32 = arith.constant 0 : i32
    %c0_i32_0 = arith.constant 0 : i32
    return %arg0, %c0_i32, %arg1 : i32, i32, i32
  }
  func.func @transform_3(%arg0: i32, %arg1: i32) -> (i32, i32, i32) {
    %c0_i32 = arith.constant 0 : i32
    %c0_i32_0 = arith.constant 0 : i32
    return %arg0, %c0_i32, %arg1 : i32, i32, i32
  }
  func.func @transform_4(%arg0: i32, %arg1: i32) -> (i32, i32, i32) {
    %c0_i32 = arith.constant 0 : i32
    %c0_i32_0 = arith.constant 0 : i32
    return %arg0, %c0_i32, %arg1 : i32, i32, i32
  }
}

</mosaic_0001>

<llo_original>
// kernel: tpu_custom_call.1
$region0: #{tpu_custom_call.1}
  #allocation0 [shape = 'u32[]', space=smem, size = 0x4, offset = 0x4, fixed_abs, tag = 'smem constant byte address 0x4 - core index']
  #allocation1 [shape = 'u32[144,128]{1,0:T(1,128)}', space=vmem, size = 0x12000, scoped, tag = 'internal scratch']
  %s0 = inlined_call_operand.vmem [shape: f32[16,1], index: 0, kind: input, shape index: {}]
  %s1 = inlined_call_operand.vmem [shape: f32[16,1], index: 1, kind: input, shape index: {}]
  %s2 = inlined_call_operand.vmem [shape: f32[2,1,256], index: 2, kind: input, shape index: {}]
  %s3 = inlined_call_operand.vmem [shape: f32[2,1,256], index: 3, kind: input, shape index: {}]
  %s4 = inlined_call_operand.hbm [shape: f32[2,32,256], index: 4, kind: output, shape index: {}]
  %s5 = sld [smem:[#allocation0]]
  $region49: #{tpu_custom_call.1} parent=0
    _
  %s7 = ssub.s32 1, %s5
  %s8 = scalar_select 0, %s7, %s5
  $region1: #{tpu_custom_call.1} parent=0
    #allocation2 [shape = 'u8[65536]{0}', space=vmem, size = 0x10000, scoped, tag = 'output window, operand 0']
    #allocation3 [shape = 's32[2]{0}', space=sflag, size = 0x8, scoped, tag = 'scoped memory for tpu_custom_call.1']
    %9 = vsyncpa [#allocation3], 0
    %s10 = scalar_lea.sflag [#allocation3], 1
    %11 = vsyncpa %s10, 0
    loop: start=0, step=1, limit=4
    $region2: #{tpu_custom_call.1} parent=1 // loop_pre_header
      _
    $region3: #{tpu_custom_call.1} parent=1 // loop_header
      %s13 = sphi 0, %s17
      %p14 = scmp.ge.s32.totalorder %s13, 4
      %s20 = sphi 0, %s32
      %s21 = sphi 0, %s28
      %s22 = sphi 0, %s20
      %s23 = sphi 0, %s21
      %s24 = sphi 0, %s22
      %s25 = sphi 0, %s23
      %s33 = sphi 0, %s33
      %s35 = sphi 0, %s33
      %s36 = sphi 0, %s35
      %s50 = sphi 0, %s36
      %s54 = sphi 0, %s54
      %s56 = sphi 0, %s54
      %s57 = sphi 0, %s56
      %s71 = sphi 0, %s57
      %s79 = sphi 0, %s81
      %s82 = sphi 0, %s79
      %s83 = sphi 0, %s82
      %s99 = sphi 0, %s83
      %s107 = sphi 0, %s109
      %s110 = sphi 0, %s107
      %s111 = sphi 0, %s110
      %s127 = sphi 0, %s111
      %s135 = sphi 0, %s137
      %s138 = sphi 0, %s135
      %s139 = sphi 0, %s138
      %s155 = sphi 0, %s139
    $region4: #{tpu_custom_call.1} parent=1 // loop_header_branch
      %16 = sbr.rel (%p14) target = $region8
    $region5: #{tpu_custom_call.1} parent=1 // loop_body
      %s18 = ssub.s32 %s13, 1
      %s19 = ssub.s32 %s13, 2
      %s26 = sadd.s32 1, %s21
      %p27 = scmp.ge.s32.totalorder %s26, 1
      %s28 = scalar_select %p27, 0, %s26
      %s29 = sadd.s32 1, %s20
      %s30 = scalar_select %p27, %s29, %s20
      %p31 = scmp.ge.s32.totalorder %s30, 2
      %s32 = scalar_select %p31, 0, %s30
      %s34 = sadd.s32 %s33, 1
      %p37 = scmp.eq.s32.totalorder %s13, 1
      %p38 = scmp.ne.s32.totalorder %s33, %s35
      %p39 = scmp.eq.s32.totalorder %s13, 0
      %p40 = por %p38, %p39
      %p41 = scmp.ne.s32.totalorder %s33, %s35
      %p42 = scmp.eq.s32.totalorder %s18, 1
      %p43 = por %p41, %p42
      %p44 = scmp.ne.s32.totalorder %s35, %s36
      %p45 = scmp.eq.s32.totalorder %s18, 0
      %p46 = por %p44, %p45
      %p47 = scmp.ne.s32.totalorder %s35, %s36
      %p48 = scmp.eq.s32.totalorder %s19, 1
      %p49 = por %p47, %p48
      %p51 = scmp.ne.s32.totalorder %s36, %s50
      %p52 = scmp.eq.s32.totalorder %s19, 0
      %p53 = por %p51, %p52
      %s55 = sadd.s32 %s54, 1
      %p58 = scmp.eq.s32.totalorder %s13, 1
      %p59 = scmp.ne.s32.totalorder %s54, %s56
      %p60 = scmp.eq.s32.totalorder %s13, 0
      %p61 = por %p59, %p60
      %p62 = scmp.ne.s32.totalorder %s54, %s56
      %p63 = scmp.eq.s32.totalorder %s18, 1
      %p64 = por %p62, %p63
      %p65 = scmp.ne.s32.totalorder %s56, %s57
      %p66 = scmp.eq.s32.totalorder %s18, 0
      %p67 = por %p65, %p66
      %p68 = scmp.ne.s32.totalorder %s56, %s57
      %p69 = scmp.eq.s32.totalorder %s19, 1
      %p70 = por %p68, %p69
      %p72 = scmp.ne.s32.totalorder %s57, %s71
      %p73 = scmp.eq.s32.totalorder %s19, 0
      %p74 = por %p72, %p73
      %s75 = ssub.s32 %s20, %s32
      %s76 = ssub.s32 %s21, %s28
      %s77 = sor.u32 %s75, %s76
      %p78 = scmp.eq.s32.totalorder %s77, 0
      %s80 = sadd.s32 %s79, 1
      %s81 = scalar_select %p78, %s79, %s80
      %p84 = pneg %p78
      %p85 = scmp.eq.s32.totalorder %s13, 1
      %p86 = por %p84, %p85
      %p87 = scmp.ne.s32.totalorder %s79, %s82
      %p88 = scmp.eq.s32.totalorder %s13, 0
      %p89 = por %p87, %p88
      %p90 = scmp.ne.s32.totalorder %s79, %s82
      %p91 = scmp.eq.s32.totalorder %s18, 1
      %p92 = por %p90, %p91
      %p93 = scmp.ne.s32.totalorder %s82, %s83
      %p94 = scmp.eq.s32.totalorder %s18, 0
      %p95 = por %p93, %p94
      %p96 = scmp.ne.s32.totalorder %s82, %s83
      %p97 = scmp.eq.s32.totalorder %s19, 1
      %p98 = por %p96, %p97
      %p100 = scmp.ne.s32.totalorder %s83, %s99
      %p101 = scmp.eq.s32.totalorder %s19, 0
      %p102 = por %p100, %p101
      %s103 = ssub.s32 %s20, %s32
      %s104 = ssub.s32 %s21, %s28
      %s105 = sor.u32 %s103, %s104
      %p106 = scmp.eq.s32.totalorder %s105, 0
      %s108 = sadd.s32 %s107, 1
      %s109 = scalar_select %p106, %s107, %s108
      %p112 = pneg %p106
      %p113 = scmp.eq.s32.totalorder %s13, 1
      %p114 = por %p112, %p113
      %p115 = scmp.ne.s32.totalorder %s107, %s110
      %p116 = scmp.eq.s32.totalorder %s13, 0
      %p117 = por %p115, %p116
      %p118 = scmp.ne.s32.totalorder %s107, %s110
      %p119 = scmp.eq.s32.totalorder %s18, 1
      %p120 = por %p118, %p119
      %p121 = scmp.ne.s32.totalorder %s110, %s111
      %p122 = scmp.eq.s32.totalorder %s18, 0
      %p123 = por %p121, %p122
      %p124 = scmp.ne.s32.totalorder %s110, %s111
      %p125 = scmp.eq.s32.totalorder %s19, 1
      %p126 = por %p124, %p125
      %p128 = scmp.ne.s32.totalorder %s111, %s127
      %p129 = scmp.eq.s32.totalorder %s19, 0
      %p130 = por %p128, %p129
      %s131 = ssub.s32 %s20, %s32
      %s132 = ssub.s32 %s21, %s28
      %s133 = sor.u32 %s131, %s132
      %p134 = scmp.eq.s32.totalorder %s133, 0
      %s136 = sadd.s32 %s135, 1
      %s137 = scalar_select %p134, %s135, %s136
      %p140 = pneg %p134
      %p141 = scmp.eq.s32.totalorder %s13, 1
      %p142 = por %p140, %p141
      %p143 = scmp.ne.s32.totalorder %s135, %s138
      %p144 = scmp.eq.s32.totalorder %s13, 0
      %p145 = por %p143, %p144
      %p146 = scmp.ne.s32.totalorder %s135, %s138
      %p147 = scmp.eq.s32.totalorder %s18, 1
      %p148 = por %p146, %p147
      %p149 = scmp.ne.s32.totalorder %s138, %s139
      %p150 = scmp.eq.s32.totalorder %s18, 0
      %p151 = por %p149, %p150
      %p152 = scmp.ne.s32.totalorder %s138, %s139
      %p153 = scmp.eq.s32.totalorder %s19, 1
      %p154 = por %p152, %p153
      %p156 = scmp.ne.s32.totalorder %s139, %s155
      %p157 = scmp.eq.s32.totalorder %s19, 0
      %p158 = por %p156, %p157
      %p159 = scmp.le.s32.totalorder 1, %s13
      %p160 = scmp.lt.s32.totalorder %s13, 3
      %p161 = pnand %p159, %p160
      %p162 = pneg %p161
      // Predicated region
      $region9: #{tpu_custom_call.1} parent=5 // pred_check
        _
      $region10: #{tpu_custom_call.1} parent=5 // pred_check_branch
        %164 = sbr.rel (%p161) target = $region12
      $region11: #{tpu_custom_call.1} parent=5 // pred_region
        %s165 = ssub.s32 %s13, 1
        // Predicated region
        $region13: #{tpu_custom_call.1} parent=11 // pred_check
          %p166 = pneg %p46
        $region14: #{tpu_custom_call.1} parent=11 // pred_check_branch
          %168 = sbr.rel (%p166) target = $region16
        $region15: #{tpu_custom_call.1} parent=11 // pred_region
          _
        $region16: #{tpu_custom_call.1} parent=11 // pred_fallthru
          _
        // Predicated region
        $region17: #{tpu_custom_call.1} parent=11 // pred_check
          %p169 = pneg %p67
        $region18: #{tpu_custom_call.1} parent=11 // pred_check_branch
          %171 = sbr.rel (%p169) target = $region20
        $region19: #{tpu_custom_call.1} parent=11 // pred_region
          _
        $region20: #{tpu_custom_call.1} parent=11 // pred_fallthru
          _
      $region12: #{tpu_custom_call.1} parent=5 // pred_fallthru
        _
      %p172 = scmp.lt.s32.totalorder %s13, 2
      // Predicated region
      $region21: #{tpu_custom_call.1} parent=5 // pred_check
        %p173 = pneg %p172
      $region22: #{tpu_custom_call.1} parent=5 // pred_check_branch
        %175 = sbr.rel (%p173) target = $region24
      $region23: #{tpu_custom_call.1} parent=5 // pred_region
        // Predicated region
        $region25: #{tpu_custom_call.1} parent=23 // pred_check
          %p176 = pneg %p89
        $region26: #{tpu_custom_call.1} parent=23 // pred_check_branch
          %178 = sbr.rel (%p176) target = $region28
        $region27: #{tpu_custom_call.1} parent=23 // pred_region
          %s179 = smul.u32 2, %s21
          %p180 = scmp.lt.s32.totalorder %s20, 1
          %s181 = scalar_select %p180, %s20, 1
          %p182 = scmp.lt.s32.totalorder %s179, 1
          %s183 = scalar_select %p182, %s179, 1
          %s184 = smul.addr %s181, 2
          %s185 = sadd.s32 %s183, %s184
          %s186 = scalar_lea.vmem %s2, %s185
          %s187 = smul.u32 2, %s21
        $region28: #{tpu_custom_call.1} parent=23 // pred_fallthru
          _
        // Predicated region
        $region29: #{tpu_custom_call.1} parent=23 // pred_check
          %p188 = pneg %p117
        $region30: #{tpu_custom_call.1} parent=23 // pred_check_branch
          %190 = sbr.rel (%p188) target = $region32
        $region31: #{tpu_custom_call.1} parent=23 // pred_region
          %s191 = smul.u32 2, %s21
          %p192 = scmp.lt.s32.totalorder %s20, 1
          %s193 = scalar_select %p192, %s20, 1
          %p194 = scmp.lt.s32.totalorder %s191, 1
          %s195 = scalar_select %p194, %s191, 1
          %s196 = smul.addr %s193, 2
          %s197 = sadd.s32 %s195, %s196
          %s198 = scalar_lea.vmem %s3, %s197
          %s199 = smul.u32 2, %s21
        $region32: #{tpu_custom_call.1} parent=23 // pred_fallthru
          _
      $region24: #{tpu_custom_call.1} parent=5 // pred_fallthru
        _
      %p200 = scmp.le.s32.totalorder 1, %s13
      %p201 = scmp.lt.s32.totalorder %s13, 3
      %p202 = pnand %p200, %p201
      %p203 = pneg %p202
      // Predicated region
      $region33: #{tpu_custom_call.1} parent=5 // pred_check
        _
      $region34: #{tpu_custom_call.1} parent=5 // pred_check_branch
        %205 = sbr.rel (%p202) target = $region36
      $region35: #{tpu_custom_call.1} parent=5 // pred_region
        %s206 = ssub.s32 %s13, 1
        %p207 = pneg %p46
        %p208 = pneg %p43
        %p209 = pneg %p67
        %p210 = pneg %p64
        %s211 = smul.u32 2, %s23
        %p212 = scmp.lt.s32.totalorder %s22, 1
        %s213 = scalar_select %p212, %s22, 1
        %p214 = scmp.lt.s32.totalorder %s211, 1
        %s215 = scalar_select %p214, %s211, 1
        %s216 = smul.addr %s213, 2
        %s217 = sadd.s32 %s215, %s216
        %s218 = scalar_lea.vmem %s2, %s217
        %p219 = pneg %p95
        %p220 = pneg %p92
        %s221 = smul.u32 2, %s23
        %p222 = scmp.lt.s32.totalorder %s22, 1
        %s223 = scalar_select %p222, %s22, 1
        %p224 = scmp.lt.s32.totalorder %s221, 1
        %s225 = scalar_select %p224, %s221, 1
        %s226 = smul.addr %s223, 2
        %s227 = sadd.s32 %s225, %s226
        %s228 = scalar_lea.vmem %s3, %s227
        %p229 = pneg %p123
        %p230 = pneg %p120
        %p231 = pneg %p151
        %p232 = pneg %p148
        %s233 = sand.u32 %s138, 1
        %s234 = scalar_lea.sflag [#allocation3], %s233
        %s235 = sand.u32 %s138, 1
        %s236 = smul.addr %s235, 64
        %s237 = scalar_lea.vmem [#allocation2], %s236
        %s238 = smul.u32 2, %s23
        %p239 = scmp.lt.s32.totalorder %s22, 1
        %s240 = scalar_select %p239, %s22, 1
        %p241 = scmp.lt.s32.totalorder %s238, 1
        %s242 = scalar_select %p241, %s238, 1
        %s243 = smul.addr %s240, 2
        %s244 = sadd.s32 %s242, %s243
        %s245 = scalar_lea.vmem %s2, %s244
        %s246 = smul.u32 2, %s23
        %s247 = smul.u32 2, %s23
        %p248 = scmp.lt.s32.totalorder %s22, 1
        %s249 = scalar_select %p248, %s22, 1
        %p250 = scmp.lt.s32.totalorder %s247, 1
        %s251 = scalar_select %p250, %s247, 1
        %s252 = smul.addr %s249, 2
        %s253 = sadd.s32 %s251, %s252
        %s254 = scalar_lea.vmem %s3, %s253
        %s255 = smul.u32 2, %s23
        %s256 = smul.u32 2, %s23
        %v257 = vld [vmem:[%s0] sm:$0xff]
        %v258 = vld [vmem:[%s0 + $0x8] sm:$0xff]
        %v259 = vld [vmem:[%s1] sm:$0xff]
        %v260 = vld [vmem:[%s1 + $0x8] sm:$0xff]
        %v261 = vld [vmem:[%s245] sm:$0x3]
        %v262 = vld [vmem:[%s254] sm:$0x3]
        %v264 = vlaneseq
        %v265 = vshrl.u32 %v264, 7
        %v266 = vsub.s32 0, %v265
        %v267 = vrot.slane %v261, %v266
        %v268 = vlaneseq
        %v269 = vshrl.u32 %v268, 7
        %v270 = vsub.s32 1, %v269
        %v271 = vrot.slane %v261, %v270
        %275 = vset.pattern.permute.xlu0 0
        %276 = vperm.xlu0 %275, %v257
        %v277 = vpop.permute.xlu0 %276
        %280 = vset.pattern.permute.xlu0 0
        %281 = vperm.xlu0 %280, %v258
        %v282 = vpop.permute.xlu0 %281
        %v284 = vmul.f32 %v267, %v277
        %v285 = vmul.f32 %v271, %v277
        %v286 = vmul.f32 %v267, %v282
        %v287 = vmul.f32 %v271, %v282
        %289 = vset.pattern.permute.xlu0 0
        %290 = vperm.xlu0 %289, %v259
        %v291 = vpop.permute.xlu0 %290
        %294 = vset.pattern.permute.xlu0 0
        %295 = vperm.xlu0 %294, %v260
        %v296 = vpop.permute.xlu0 %295
        %v298 = vadd.f32 %v284, %v291
        %v299 = vadd.f32 %v285, %v291
        %v300 = vadd.f32 %v286, %v296
        %v301 = vadd.f32 %v287, %v296
        %v302 = vand.u32 2147483647, %v298
        %vm303 = vcmp.le.f32.partialorder %v302, 0.7853982
        %vm304 = vcmp.lt.s32.totalorder %v298, 0
        %v305 = vand.u32 %v298, 2139095040
        %v306 = vshrl.u32 %v305, 23
        %v307 = vsub.s32 %v306, 127
        %v308 = vand.u32 2147483647, %v298
        %v309 = vand.u32 %v308, 8388607
        %v310 = vor.u32 %v309, 8388608
        %v311 = vsub.s32 0, %v310
        %v312 = vadd.s32 %v307, 1
        %vm313 = vcmp.gt.s32.totalorder %v312, 0
        %v314 = vsel %vm313, %v312, 0
        %v315 = vshrl.u32 %v314, 5
        %v316 = vand.u32 %v314, 31
        %v317 = vsub.s32 32, %v316
        %v318 = vshrl.u32 683565275, %v317
        %v319 = vshll.u32 683565275, %v316
        %v320 = vshrl.u32 2475754826, %v317
        %v321 = vor.u32 %v319, %v320
        %v322 = vshll.u32 2475754826, %v316
        %v323 = vshrl.u32 2131351028, %v317
        %v324 = vor.u32 %v322, %v323
        %v325 = vshll.u32 2131351028, %v316
        %v326 = vshrl.u32 2102212464, %v317
        %v327 = vor.u32 %v325, %v326
        %v328 = vshll.u32 2102212464, %v316
        %v329 = vshrl.u32 920167782, %v317
        %v330 = vor.u32 %v328, %v329
        %v331 = vshll.u32 920167782, %v316
        %v332 = vshrl.u32 1326507024, %v317
        %v333 = vor.u32 %v331, %v332
        %vm334 = vcmp.lt.s32.totalorder %v315, 1
        %vm335 = vcmp.lt.s32.totalorder %v315, 2
        %vm336 = vcmp.lt.s32.totalorder %v315, 3
        %vm337 = vcmp.lt.s32.totalorder %v315, 4
        %v338 = vsel %vm334, %v318, %v321
        %v339 = vsel %vm337, %v327, 2102212464
        %v340 = vsel %vm336, %v324, %v339
        %v341 = vsel %vm335, %v338, %v340
        %v342 = vsel %vm334, %v321, %v324
        %v343 = vsel %vm337, %v330, 920167782
        %v344 = vsel %vm336, %v327, %v343
        %v345 = vsel %vm335, %v342, %v344
        %v346 = vsel %vm334, %v324, %v327
        %v347 = vsel %vm337, %v333, 1326507024
        %v348 = vsel %vm336, %v330, %v347
        %v349 = vsel %vm335, %v346, %v348
        %v350 = vshll.u32 %v310, 8
        %v351 = vmul.u32.u64.compose %v350, %v349
        %v352 = vextract.low.u32 %v351
        %v353 = vextract.high.u32 %v351
        %v354 = vmul.u32.u64.compose %v350, %v345
        %v355 = vextract.low.u32 %v354
        %v356 = vextract.high.u32 %v354
        %v357 = vmul.u32 %v350, %v341
        %v358 = vadd.s32 %v353, %v355
        %vm359 = vc.u32 %v353, %v355
        %v360 = vadd.s32 %v356, 1
        %v361 = vsel %vm359, %v360, %v356
        %v362 = vadd.s32 %v357, %v361
        %v363 = vadd.s32 %v362, 536870912
        %v364 = vshrl.u32 %v363, 30
        %v365 = vshll.u32 %v364, 30
        %v366 = vsub.s32 %v362, %v365
        %vm367 = vcmp.lt.s32.totalorder %v366, 0
        %v368 = vsub.s32 0, %v366
        %v369 = vsel %vm367, %v368, %v366
        %v370 = vclz %v369
        %v371 = vsub.s32 %v370, 2
        %vm372 = vcmp.gt.s32.totalorder 0, %v371
        %v373 = vsel %vm372, 0, %v371
        %v374 = vsub.s32 32, %v373
        %v375 = vshll.u32 %v366, %v373
        %v376 = vshrl.u32 %v358, %v374
        %v377 = vor.u32 %v375, %v376
        %v378 = vsub.s32 4294967266, %v373
        %v379 = vadd.s32 %v378, 127
        %v380 = vshll.u32 %v379, 23
        %v381 = vor.u32 4788187, %v380
        %v382 = vand.u32 2147483647, %v381
        %v384 = vcvt.s32.f32 %v377
        %v385 = vmul.f32 %v384, %v382
        %v386 = vxor.u32 %v385, 2147483648
        %v387 = vsel %vm304, %v386, %v385
        %v388 = vsub.s32 4, %v364
        %v389 = vsel %vm304, %v388, %v364
        %v390 = vsel %vm303, %v298, %v387
        %v391 = vsel %vm303, 0, %v389
        %v392 = vcosq.f32.pop %v390
        %v393 = vsinq.f32.pop %v390
        %vm394 = vweird.f32 %v298
        %v395 = vadd.s32 %v391, 3
        %v396 = vand.u32 %v395, 3
        %vm397 = vcmp.lt.s32.totalorder %v396, 2
        %vm398 = vcmp.eq.s32.totalorder %v396, 0
        %v399 = vxor.u32 %v393, 2147483648
        %v400 = vsel %vm398, %v392, %v399
        %vm401 = vcmp.eq.s32.totalorder %v396, 2
        %v402 = vxor.u32 %v392, 2147483648
        %v403 = vsel %vm401, %v402, %v393
        %v404 = vsel %vm397, %v400, %v403
        %v405 = vsel %vm394, nan, %v404
        %v406 = vand.u32 2147483647, %v299
        %vm407 = vcmp.le.f32.partialorder %v406, 0.7853982
        %vm408 = vcmp.lt.s32.totalorder %v299, 0
        %v409 = vand.u32 %v299, 2139095040
        %v410 = vshrl.u32 %v409, 23
        %v411 = vsub.s32 %v410, 127
        %v412 = vand.u32 2147483647, %v299
        %v413 = vand.u32 %v412, 8388607
        %v414 = vor.u32 %v413, 8388608
        %v415 = vsub.s32 0, %v414
        %v416 = vadd.s32 %v411, 1
        %vm417 = vcmp.gt.s32.totalorder %v416, 0
        %v418 = vsel %vm417, %v416, 0
        %v419 = vshrl.u32 %v418, 5
        %v420 = vand.u32 %v418, 31
        %v421 = vsub.s32 32, %v420
        %v422 = vshrl.u32 683565275, %v421
        %v423 = vshll.u32 683565275, %v420
        %v424 = vshrl.u32 2475754826, %v421
        %v425 = vor.u32 %v423, %v424
        %v426 = vshll.u32 2475754826, %v420
        %v427 = vshrl.u32 2131351028, %v421
        %v428 = vor.u32 %v426, %v427
        %v429 = vshll.u32 2131351028, %v420
        %v430 = vshrl.u32 2102212464, %v421
        %v431 = vor.u32 %v429, %v430
        %v432 = vshll.u32 2102212464, %v420
        %v433 = vshrl.u32 920167782, %v421
        %v434 = vor.u32 %v432, %v433
        %v435 = vshll.u32 920167782, %v420
        %v436 = vshrl.u32 1326507024, %v421
        %v437 = vor.u32 %v435, %v436
        %vm438 = vcmp.lt.s32.totalorder %v419, 1
        %vm439 = vcmp.lt.s32.totalorder %v419, 2
        %vm440 = vcmp.lt.s32.totalorder %v419, 3
        %vm441 = vcmp.lt.s32.totalorder %v419, 4
        %v442 = vsel %vm438, %v422, %v425
        %v443 = vsel %vm441, %v431, 2102212464
        %v444 = vsel %vm440, %v428, %v443
        %v445 = vsel %vm439, %v442, %v444
        %v446 = vsel %vm438, %v425, %v428
        %v447 = vsel %vm441, %v434, 920167782
        %v448 = vsel %vm440, %v431, %v447
        %v449 = vsel %vm439, %v446, %v448
        %v450 = vsel %vm438, %v428, %v431
        %v451 = vsel %vm441, %v437, 1326507024
        %v452 = vsel %vm440, %v434, %v451
        %v453 = vsel %vm439, %v450, %v452
        %v454 = vshll.u32 %v414, 8
        %v455 = vmul.u32.u64.compose %v454, %v453
        %v456 = vextract.low.u32 %v455
        %v457 = vextract.high.u32 %v455
        %v458 = vmul.u32.u64.compose %v454, %v449
        %v459 = vextract.low.u32 %v458
        %v460 = vextract.high.u32 %v458
        %v461 = vmul.u32 %v454, %v445
        %v462 = vadd.s32 %v457, %v459
        %vm463 = vc.u32 %v457, %v459
        %v464 = vadd.s32 %v460, 1
        %v465 = vsel %vm463, %v464, %v460
        %v466 = vadd.s32 %v461, %v465
        %v467 = vadd.s32 %v466, 536870912
        %v468 = vshrl.u32 %v467, 30
        %v469 = vshll.u32 %v468, 30
        %v470 = vsub.s32 %v466, %v469
        %vm471 = vcmp.lt.s32.totalorder %v470, 0
        %v472 = vsub.s32 0, %v470
        %v473 = vsel %vm471, %v472, %v470
        %v474 = vclz %v473
        %v475 = vsub.s32 %v474, 2
        %vm476 = vcmp.gt.s32.totalorder 0, %v475
        %v477 = vsel %vm476, 0, %v475
        %v478 = vsub.s32 32, %v477
        %v479 = vshll.u32 %v470, %v477
        %v480 = vshrl.u32 %v462, %v478
        %v481 = vor.u32 %v479, %v480
        %v482 = vsub.s32 4294967266, %v477
        %v483 = vadd.s32 %v482, 127
        %v484 = vshll.u32 %v483, 23
        %v485 = vor.u32 4788187, %v484
        %v486 = vand.u32 2147483647, %v485
        %v488 = vcvt.s32.f32 %v481
        %v489 = vmul.f32 %v488, %v486
        %v490 = vxor.u32 %v489, 2147483648
        %v491 = vsel %vm408, %v490, %v489
        %v492 = vsub.s32 4, %v468
        %v493 = vsel %vm408, %v492, %v468
        %v494 = vsel %vm407, %v299, %v491
        %v495 = vsel %vm407, 0, %v493
        %v496 = vcosq.f32.pop %v494
        %v497 = vsinq.f32.pop %v494
        %vm498 = vweird.f32 %v299
        %v499 = vadd.s32 %v495, 3
        %v500 = vand.u32 %v499, 3
        %vm501 = vcmp.lt.s32.totalorder %v500, 2
        %vm502 = vcmp.eq.s32.totalorder %v500, 0
        %v503 = vxor.u32 %v497, 2147483648
        %v504 = vsel %vm502, %v496, %v503
        %vm505 = vcmp.eq.s32.totalorder %v500, 2
        %v506 = vxor.u32 %v496, 2147483648
        %v507 = vsel %vm505, %v506, %v497
        %v508 = vsel %vm501, %v504, %v507
        %v509 = vsel %vm498, nan, %v508
        %v510 = vand.u32 2147483647, %v300
        %vm511 = vcmp.le.f32.partialorder %v510, 0.7853982
        %vm512 = vcmp.lt.s32.totalorder %v300, 0
        %v513 = vand.u32 %v300, 2139095040
        %v514 = vshrl.u32 %v513, 23
        %v515 = vsub.s32 %v514, 127
        %v516 = vand.u32 2147483647, %v300
        %v517 = vand.u32 %v516, 8388607
        %v518 = vor.u32 %v517, 8388608
        %v519 = vsub.s32 0, %v518
        %v520 = vadd.s32 %v515, 1
        %vm521 = vcmp.gt.s32.totalorder %v520, 0
        %v522 = vsel %vm521, %v520, 0
        %v523 = vshrl.u32 %v522, 5
        %v524 = vand.u32 %v522, 31
        %v525 = vsub.s32 32, %v524
        %v526 = vshrl.u32 683565275, %v525
        %v527 = vshll.u32 683565275, %v524
        %v528 = vshrl.u32 2475754826, %v525
        %v529 = vor.u32 %v527, %v528
        %v530 = vshll.u32 2475754826, %v524
        %v531 = vshrl.u32 2131351028, %v525
        %v532 = vor.u32 %v530, %v531
        %v533 = vshll.u32 2131351028, %v524
        %v534 = vshrl.u32 2102212464, %v525
        %v535 = vor.u32 %v533, %v534
        %v536 = vshll.u32 2102212464, %v524
        %v537 = vshrl.u32 920167782, %v525
        %v538 = vor.u32 %v536, %v537
        %v539 = vshll.u32 920167782, %v524
        %v540 = vshrl.u32 1326507024, %v525
        %v541 = vor.u32 %v539, %v540
        %vm542 = vcmp.lt.s32.totalorder %v523, 1
        %vm543 = vcmp.lt.s32.totalorder %v523, 2
        %vm544 = vcmp.lt.s32.totalorder %v523, 3
        %vm545 = vcmp.lt.s32.totalorder %v523, 4
        %v546 = vsel %vm542, %v526, %v529
        %v547 = vsel %vm545, %v535, 2102212464
        %v548 = vsel %vm544, %v532, %v547
        %v549 = vsel %vm543, %v546, %v548
        %v550 = vsel %vm542, %v529, %v532
        %v551 = vsel %vm545, %v538, 920167782
        %v552 = vsel %vm544, %v535, %v551
        %v553 = vsel %vm543, %v550, %v552
        %v554 = vsel %vm542, %v532, %v535
        %v555 = vsel %vm545, %v541, 1326507024
        %v556 = vsel %vm544, %v538, %v555
        %v557 = vsel %vm543, %v554, %v556
        %v558 = vshll.u32 %v518, 8
        %v559 = vmul.u32.u64.compose %v558, %v557
        %v560 = vextract.low.u32 %v559
        %v561 = vextract.high.u32 %v559
        %v562 = vmul.u32.u64.compose %v558, %v553
        %v563 = vextract.low.u32 %v562
        %v564 = vextract.high.u32 %v562
        %v565 = vmul.u32 %v558, %v549
        %v566 = vadd.s32 %v561, %v563
        %vm567 = vc.u32 %v561, %v563
        %v568 = vadd.s32 %v564, 1
        %v569 = vsel %vm567, %v568, %v564
        %v570 = vadd.s32 %v565, %v569
        %v571 = vadd.s32 %v570, 536870912
        %v572 = vshrl.u32 %v571, 30
        %v573 = vshll.u32 %v572, 30
        %v574 = vsub.s32 %v570, %v573
        %vm575 = vcmp.lt.s32.totalorder %v574, 0
        %v576 = vsub.s32 0, %v574
        %v577 = vsel %vm575, %v576, %v574
        %v578 = vclz %v577
        %v579 = vsub.s32 %v578, 2
        %vm580 = vcmp.gt.s32.totalorder 0, %v579
        %v581 = vsel %vm580, 0, %v579
        %v582 = vsub.s32 32, %v581
        %v583 = vshll.u32 %v574, %v581
        %v584 = vshrl.u32 %v566, %v582
        %v585 = vor.u32 %v583, %v584
        %v586 = vsub.s32 4294967266, %v581
        %v587 = vadd.s32 %v586, 127
        %v588 = vshll.u32 %v587, 23
        %v589 = vor.u32 4788187, %v588
        %v590 = vand.u32 2147483647, %v589
        %v592 = vcvt.s32.f32 %v585
        %v593 = vmul.f32 %v592, %v590
        %v594 = vxor.u32 %v593, 2147483648
        %v595 = vsel %vm512, %v594, %v593
        %v596 = vsub.s32 4, %v572
        %v597 = vsel %vm512, %v596, %v572
        %v598 = vsel %vm511, %v300, %v595
        %v599 = vsel %vm511, 0, %v597
        %v600 = vcosq.f32.pop %v598
        %v601 = vsinq.f32.pop %v598
        %vm602 = vweird.f32 %v300
        %v603 = vadd.s32 %v599, 3
        %v604 = vand.u32 %v603, 3
        %vm605 = vcmp.lt.s32.totalorder %v604, 2
        %vm606 = vcmp.eq.s32.totalorder %v604, 0
        %v607 = vxor.u32 %v601, 2147483648
        %v608 = vsel %vm606, %v600, %v607
        %vm609 = vcmp.eq.s32.totalorder %v604, 2
        %v610 = vxor.u32 %v600, 2147483648
        %v611 = vsel %vm609, %v610, %v601
        %v612 = vsel %vm605, %v608, %v611
        %v613 = vsel %vm602, nan, %v612
        %v614 = vand.u32 2147483647, %v301
        %vm615 = vcmp.le.f32.partialorder %v614, 0.7853982
        %vm616 = vcmp.lt.s32.totalorder %v301, 0
        %v617 = vand.u32 %v301, 2139095040
        %v618 = vshrl.u32 %v617, 23
        %v619 = vsub.s32 %v618, 127
        %v620 = vand.u32 2147483647, %v301
        %v621 = vand.u32 %v620, 8388607
        %v622 = vor.u32 %v621, 8388608
        %v623 = vsub.s32 0, %v622
        %v624 = vadd.s32 %v619, 1
        %vm625 = vcmp.gt.s32.totalorder %v624, 0
        %v626 = vsel %vm625, %v624, 0
        %v627 = vshrl.u32 %v626, 5
        %v628 = vand.u32 %v626, 31
        %v629 = vsub.s32 32, %v628
        %v630 = vshrl.u32 683565275, %v629
        %v631 = vshll.u32 683565275, %v628
        %v632 = vshrl.u32 2475754826, %v629
        %v633 = vor.u32 %v631, %v632
        %v634 = vshll.u32 2475754826, %v628
        %v635 = vshrl.u32 2131351028, %v629
        %v636 = vor.u32 %v634, %v635
        %v637 = vshll.u32 2131351028, %v628
        %v638 = vshrl.u32 2102212464, %v629
        %v639 = vor.u32 %v637, %v638
        %v640 = vshll.u32 2102212464, %v628
        %v641 = vshrl.u32 920167782, %v629
        %v642 = vor.u32 %v640, %v641
        %v643 = vshll.u32 920167782, %v628
        %v644 = vshrl.u32 1326507024, %v629
        %v645 = vor.u32 %v643, %v644
        %vm646 = vcmp.lt.s32.totalorder %v627, 1
        %vm647 = vcmp.lt.s32.totalorder %v627, 2
        %vm648 = vcmp.lt.s32.totalorder %v627, 3
        %vm649 = vcmp.lt.s32.totalorder %v627, 4
        %v650 = vsel %vm646, %v630, %v633
        %v651 = vsel %vm649, %v639, 2102212464
        %v652 = vsel %vm648, %v636, %v651
        %v653 = vsel %vm647, %v650, %v652
        %v654 = vsel %vm646, %v633, %v636
        %v655 = vsel %vm649, %v642, 920167782
        %v656 = vsel %vm648, %v639, %v655
        %v657 = vsel %vm647, %v654, %v656
        %v658 = vsel %vm646, %v636, %v639
        %v659 = vsel %vm649, %v645, 1326507024
        %v660 = vsel %vm648, %v642, %v659
        %v661 = vsel %vm647, %v658, %v660
        %v662 = vshll.u32 %v622, 8
        %v663 = vmul.u32.u64.compose %v662, %v661
        %v664 = vextract.low.u32 %v663
        %v665 = vextract.high.u32 %v663
        %v666 = vmul.u32.u64.compose %v662, %v657
        %v667 = vextract.low.u32 %v666
        %v668 = vextract.high.u32 %v666
        %v669 = vmul.u32 %v662, %v653
        %v670 = vadd.s32 %v665, %v667
        %vm671 = vc.u32 %v665, %v667
        %v672 = vadd.s32 %v668, 1
        %v673 = vsel %vm671, %v672, %v668
        %v674 = vadd.s32 %v669, %v673
        %v675 = vadd.s32 %v674, 536870912
        %v676 = vshrl.u32 %v675, 30
        %v677 = vshll.u32 %v676, 30
        %v678 = vsub.s32 %v674, %v677
        %vm679 = vcmp.lt.s32.totalorder %v678, 0
        %v680 = vsub.s32 0, %v678
        %v681 = vsel %vm679, %v680, %v678
        %v682 = vclz %v681
        %v683 = vsub.s32 %v682, 2
        %vm684 = vcmp.gt.s32.totalorder 0, %v683
        %v685 = vsel %vm684, 0, %v683
        %v686 = vsub.s32 32, %v685
        %v687 = vshll.u32 %v678, %v685
        %v688 = vshrl.u32 %v670, %v686
        %v689 = vor.u32 %v687, %v688
        %v690 = vsub.s32 4294967266, %v685
        %v691 = vadd.s32 %v690, 127
        %v692 = vshll.u32 %v691, 23
        %v693 = vor.u32 4788187, %v692
        %v694 = vand.u32 2147483647, %v693
        %v696 = vcvt.s32.f32 %v689
        %v697 = vmul.f32 %v696, %v694
        %v698 = vxor.u32 %v697, 2147483648
        %v699 = vsel %vm616, %v698, %v697
        %v700 = vsub.s32 4, %v676
        %v701 = vsel %vm616, %v700, %v676
        %v702 = vsel %vm615, %v301, %v699
        %v703 = vsel %vm615, 0, %v701
        %v704 = vcosq.f32.pop %v702
        %v705 = vsinq.f32.pop %v702
        %vm706 = vweird.f32 %v301
        %v707 = vadd.s32 %v703, 3
        %v708 = vand.u32 %v707, 3
        %vm709 = vcmp.lt.s32.totalorder %v708, 2
        %vm710 = vcmp.eq.s32.totalorder %v708, 0
        %v711 = vxor.u32 %v705, 2147483648
        %v712 = vsel %vm710, %v704, %v711
        %vm713 = vcmp.eq.s32.totalorder %v708, 2
        %v714 = vxor.u32 %v704, 2147483648
        %v715 = vsel %vm713, %v714, %v705
        %v716 = vsel %vm709, %v712, %v715
        %v717 = vsel %vm706, nan, %v716
        %718 = vst [vmem:[%s237] sm:$0xff] %v405
        %719 = vst [vmem:[%s237 + $0x8] sm:$0xff] %v509
        %720 = vst [vmem:[%s237 + $0x10] sm:$0xff] %v613
        %721 = vst [vmem:[%s237 + $0x18] sm:$0xff] %v717
        %v723 = vlaneseq
        %v724 = vshrl.u32 %v723, 7
        %v725 = vsub.s32 0, %v724
        %v726 = vrot.slane %v262, %v725
        %v727 = vlaneseq
        %v728 = vshrl.u32 %v727, 7
        %v729 = vsub.s32 1, %v728
        %v730 = vrot.slane %v262, %v729
        %v733 = vmul.f32 %v726, %v277
        %v734 = vmul.f32 %v730, %v277
        %v735 = vmul.f32 %v726, %v282
        %v736 = vmul.f32 %v730, %v282
        %v737 = vadd.f32 %v733, %v291
        %v738 = vadd.f32 %v734, %v291
        %v739 = vadd.f32 %v735, %v296
        %v740 = vadd.f32 %v736, %v296
        %v741 = vand.u32 2147483647, %v737
        %vm742 = vcmp.le.f32.partialorder %v741, 0.7853982
        %vm743 = vcmp.lt.s32.totalorder %v737, 0
        %v744 = vand.u32 %v737, 2139095040
        %v745 = vshrl.u32 %v744, 23
        %v746 = vsub.s32 %v745, 127
        %v747 = vand.u32 2147483647, %v737
        %v748 = vand.u32 %v747, 8388607
        %v749 = vor.u32 %v748, 8388608
        %v750 = vsub.s32 0, %v749
        %v751 = vadd.s32 %v746, 1
        %vm752 = vcmp.gt.s32.totalorder %v751, 0
        %v753 = vsel %vm752, %v751, 0
        %v754 = vshrl.u32 %v753, 5
        %v755 = vand.u32 %v753, 31
        %v756 = vsub.s32 32, %v755
        %v757 = vshrl.u32 683565275, %v756
        %v758 = vshll.u32 683565275, %v755
        %v759 = vshrl.u32 2475754826, %v756
        %v760 = vor.u32 %v758, %v759
        %v761 = vshll.u32 2475754826, %v755
        %v762 = vshrl.u32 2131351028, %v756
        %v763 = vor.u32 %v761, %v762
        %v764 = vshll.u32 2131351028, %v755
        %v765 = vshrl.u32 2102212464, %v756
        %v766 = vor.u32 %v764, %v765
        %v767 = vshll.u32 2102212464, %v755
        %v768 = vshrl.u32 920167782, %v756
        %v769 = vor.u32 %v767, %v768
        %v770 = vshll.u32 920167782, %v755
        %v771 = vshrl.u32 1326507024, %v756
        %v772 = vor.u32 %v770, %v771
        %vm773 = vcmp.lt.s32.totalorder %v754, 1
        %vm774 = vcmp.lt.s32.totalorder %v754, 2
        %vm775 = vcmp.lt.s32.totalorder %v754, 3
        %vm776 = vcmp.lt.s32.totalorder %v754, 4
        %v777 = vsel %vm773, %v757, %v760
        %v778 = vsel %vm776, %v766, 2102212464
        %v779 = vsel %vm775, %v763, %v778
        %v780 = vsel %vm774, %v777, %v779
        %v781 = vsel %vm773, %v760, %v763
        %v782 = vsel %vm776, %v769, 920167782
        %v783 = vsel %vm775, %v766, %v782
        %v784 = vsel %vm774, %v781, %v783
        %v785 = vsel %vm773, %v763, %v766
        %v786 = vsel %vm776, %v772, 1326507024
        %v787 = vsel %vm775, %v769, %v786
        %v788 = vsel %vm774, %v785, %v787
        %v789 = vshll.u32 %v749, 8
        %v790 = vmul.u32.u64.compose %v789, %v788
        %v791 = vextract.low.u32 %v790
        %v792 = vextract.high.u32 %v790
        %v793 = vmul.u32.u64.compose %v789, %v784
        %v794 = vextract.low.u32 %v793
        %v795 = vextract.high.u32 %v793
        %v796 = vmul.u32 %v789, %v780
        %v797 = vadd.s32 %v792, %v794
        %vm798 = vc.u32 %v792, %v794
        %v799 = vadd.s32 %v795, 1
        %v800 = vsel %vm798, %v799, %v795
        %v801 = vadd.s32 %v796, %v800
        %v802 = vadd.s32 %v801, 536870912
        %v803 = vshrl.u32 %v802, 30
        %v804 = vshll.u32 %v803, 30
        %v805 = vsub.s32 %v801, %v804
        %vm806 = vcmp.lt.s32.totalorder %v805, 0
        %v807 = vsub.s32 0, %v805
        %v808 = vsel %vm806, %v807, %v805
        %v809 = vclz %v808
        %v810 = vsub.s32 %v809, 2
        %vm811 = vcmp.gt.s32.totalorder 0, %v810
        %v812 = vsel %vm811, 0, %v810
        %v813 = vsub.s32 32, %v812
        %v814 = vshll.u32 %v805, %v812
        %v815 = vshrl.u32 %v797, %v813
        %v816 = vor.u32 %v814, %v815
        %v817 = vsub.s32 4294967266, %v812
        %v818 = vadd.s32 %v817, 127
        %v819 = vshll.u32 %v818, 23
        %v820 = vor.u32 4788187, %v819
        %v821 = vand.u32 2147483647, %v820
        %v823 = vcvt.s32.f32 %v816
        %v824 = vmul.f32 %v823, %v821
        %v825 = vxor.u32 %v824, 2147483648
        %v826 = vsel %vm743, %v825, %v824
        %v827 = vsub.s32 4, %v803
        %v828 = vsel %vm743, %v827, %v803
        %v829 = vsel %vm742, %v737, %v826
        %v830 = vsel %vm742, 0, %v828
        %v831 = vcosq.f32.pop %v829
        %v832 = vsinq.f32.pop %v829
        %vm833 = vweird.f32 %v737
        %v834 = vadd.s32 %v830, 3
        %v835 = vand.u32 %v834, 3
        %vm836 = vcmp.lt.s32.totalorder %v835, 2
        %vm837 = vcmp.eq.s32.totalorder %v835, 0
        %v838 = vxor.u32 %v832, 2147483648
        %v839 = vsel %vm837, %v831, %v838
        %vm840 = vcmp.eq.s32.totalorder %v835, 2
        %v841 = vxor.u32 %v831, 2147483648
        %v842 = vsel %vm840, %v841, %v832
        %v843 = vsel %vm836, %v839, %v842
        %v844 = vsel %vm833, nan, %v843
        %v845 = vand.u32 2147483647, %v738
        %vm846 = vcmp.le.f32.partialorder %v845, 0.7853982
        %vm847 = vcmp.lt.s32.totalorder %v738, 0
        %v848 = vand.u32 %v738, 2139095040
        %v849 = vshrl.u32 %v848, 23
        %v850 = vsub.s32 %v849, 127
        %v851 = vand.u32 2147483647, %v738
        %v852 = vand.u32 %v851, 8388607
        %v853 = vor.u32 %v852, 8388608
        %v854 = vsub.s32 0, %v853
        %v855 = vadd.s32 %v850, 1
        %vm856 = vcmp.gt.s32.totalorder %v855, 0
        %v857 = vsel %vm856, %v855, 0
        %v858 = vshrl.u32 %v857, 5
        %v859 = vand.u32 %v857, 31
        %v860 = vsub.s32 32, %v859
        %v861 = vshrl.u32 683565275, %v860
        %v862 = vshll.u32 683565275, %v859
        %v863 = vshrl.u32 2475754826, %v860
        %v864 = vor.u32 %v862, %v863
        %v865 = vshll.u32 2475754826, %v859
        %v866 = vshrl.u32 2131351028, %v860
        %v867 = vor.u32 %v865, %v866
        %v868 = vshll.u32 2131351028, %v859
        %v869 = vshrl.u32 2102212464, %v860
        %v870 = vor.u32 %v868, %v869
        %v871 = vshll.u32 2102212464, %v859
        %v872 = vshrl.u32 920167782, %v860
        %v873 = vor.u32 %v871, %v872
        %v874 = vshll.u32 920167782, %v859
        %v875 = vshrl.u32 1326507024, %v860
        %v876 = vor.u32 %v874, %v875
        %vm877 = vcmp.lt.s32.totalorder %v858, 1
        %vm878 = vcmp.lt.s32.totalorder %v858, 2
        %vm879 = vcmp.lt.s32.totalorder %v858, 3
        %vm880 = vcmp.lt.s32.totalorder %v858, 4
        %v881 = vsel %vm877, %v861, %v864
        %v882 = vsel %vm880, %v870, 2102212464
        %v883 = vsel %vm879, %v867, %v882
        %v884 = vsel %vm878, %v881, %v883
        %v885 = vsel %vm877, %v864, %v867
        %v886 = vsel %vm880, %v873, 920167782
        %v887 = vsel %vm879, %v870, %v886
        %v888 = vsel %vm878, %v885, %v887
        %v889 = vsel %vm877, %v867, %v870
        %v890 = vsel %vm880, %v876, 1326507024
        %v891 = vsel %vm879, %v873, %v890
        %v892 = vsel %vm878, %v889, %v891
        %v893 = vshll.u32 %v853, 8
        %v894 = vmul.u32.u64.compose %v893, %v892
        %v895 = vextract.low.u32 %v894
        %v896 = vextract.high.u32 %v894
        %v897 = vmul.u32.u64.compose %v893, %v888
        %v898 = vextract.low.u32 %v897
        %v899 = vextract.high.u32 %v897
        %v900 = vmul.u32 %v893, %v884
        %v901 = vadd.s32 %v896, %v898
        %vm902 = vc.u32 %v896, %v898
        %v903 = vadd.s32 %v899, 1
        %v904 = vsel %vm902, %v903, %v899
        %v905 = vadd.s32 %v900, %v904
        %v906 = vadd.s32 %v905, 536870912
        %v907 = vshrl.u32 %v906, 30
        %v908 = vshll.u32 %v907, 30
        %v909 = vsub.s32 %v905, %v908
        %vm910 = vcmp.lt.s32.totalorder %v909, 0
        %v911 = vsub.s32 0, %v909
        %v912 = vsel %vm910, %v911, %v909
        %v913 = vclz %v912
        %v914 = vsub.s32 %v913, 2
        %vm915 = vcmp.gt.s32.totalorder 0, %v914
        %v916 = vsel %vm915, 0, %v914
        %v917 = vsub.s32 32, %v916
        %v918 = vshll.u32 %v909, %v916
        %v919 = vshrl.u32 %v901, %v917
        %v920 = vor.u32 %v918, %v919
        %v921 = vsub.s32 4294967266, %v916
        %v922 = vadd.s32 %v921, 127
        %v923 = vshll.u32 %v922, 23
        %v924 = vor.u32 4788187, %v923
        %v925 = vand.u32 2147483647, %v924
        %v927 = vcvt.s32.f32 %v920
        %v928 = vmul.f32 %v927, %v925
        %v929 = vxor.u32 %v928, 2147483648
        %v930 = vsel %vm847, %v929, %v928
        %v931 = vsub.s32 4, %v907
        %v932 = vsel %vm847, %v931, %v907
        %v933 = vsel %vm846, %v738, %v930
        %v934 = vsel %vm846, 0, %v932
        %v935 = vcosq.f32.pop %v933
        %v936 = vsinq.f32.pop %v933
        %vm937 = vweird.f32 %v738
        %v938 = vadd.s32 %v934, 3
        %v939 = vand.u32 %v938, 3
        %vm940 = vcmp.lt.s32.totalorder %v939, 2
        %vm941 = vcmp.eq.s32.totalorder %v939, 0
        %v942 = vxor.u32 %v936, 2147483648
        %v943 = vsel %vm941, %v935, %v942
        %vm944 = vcmp.eq.s32.totalorder %v939, 2
        %v945 = vxor.u32 %v935, 2147483648
        %v946 = vsel %vm944, %v945, %v936
        %v947 = vsel %vm940, %v943, %v946
        %v948 = vsel %vm937, nan, %v947
        %v949 = vand.u32 2147483647, %v739
        %vm950 = vcmp.le.f32.partialorder %v949, 0.7853982
        %vm951 = vcmp.lt.s32.totalorder %v739, 0
        %v952 = vand.u32 %v739, 2139095040
        %v953 = vshrl.u32 %v952, 23
        %v954 = vsub.s32 %v953, 127
        %v955 = vand.u32 2147483647, %v739
        %v956 = vand.u32 %v955, 8388607
        %v957 = vor.u32 %v956, 8388608
        %v958 = vsub.s32 0, %v957
        %v959 = vadd.s32 %v954, 1
        %vm960 = vcmp.gt.s32.totalorder %v959, 0
        %v961 = vsel %vm960, %v959, 0
        %v962 = vshrl.u32 %v961, 5
        %v963 = vand.u32 %v961, 31
        %v964 = vsub.s32 32, %v963
        %v965 = vshrl.u32 683565275, %v964
        %v966 = vshll.u32 683565275, %v963
        %v967 = vshrl.u32 2475754826, %v964
        %v968 = vor.u32 %v966, %v967
        %v969 = vshll.u32 2475754826, %v963
        %v970 = vshrl.u32 2131351028, %v964
        %v971 = vor.u32 %v969, %v970
        %v972 = vshll.u32 2131351028, %v963
        %v973 = vshrl.u32 2102212464, %v964
        %v974 = vor.u32 %v972, %v973
        %v975 = vshll.u32 2102212464, %v963
        %v976 = vshrl.u32 920167782, %v964
        %v977 = vor.u32 %v975, %v976
        %v978 = vshll.u32 920167782, %v963
        %v979 = vshrl.u32 1326507024, %v964
        %v980 = vor.u32 %v978, %v979
        %vm981 = vcmp.lt.s32.totalorder %v962, 1
        %vm982 = vcmp.lt.s32.totalorder %v962, 2
        %vm983 = vcmp.lt.s32.totalorder %v962, 3
        %vm984 = vcmp.lt.s32.totalorder %v962, 4
        %v985 = vsel %vm981, %v965, %v968
        %v986 = vsel %vm984, %v974, 2102212464
        %v987 = vsel %vm983, %v971, %v986
        %v988 = vsel %vm982, %v985, %v987
        %v989 = vsel %vm981, %v968, %v971
        %v990 = vsel %vm984, %v977, 920167782
        %v991 = vsel %vm983, %v974, %v990
        %v992 = vsel %vm982, %v989, %v991
        %v993 = vsel %vm981, %v971, %v974
        %v994 = vsel %vm984, %v980, 1326507024
        %v995 = vsel %vm983, %v977, %v994
        %v996 = vsel %vm982, %v993, %v995
        %v997 = vshll.u32 %v957, 8
        %v998 = vmul.u32.u64.compose %v997, %v996
        %v999 = vextract.low.u32 %v998
        %v1000 = vextract.high.u32 %v998
        %v1001 = vmul.u32.u64.compose %v997, %v992
        %v1002 = vextract.low.u32 %v1001
        %v1003 = vextract.high.u32 %v1001
        %v1004 = vmul.u32 %v997, %v988
        %v1005 = vadd.s32 %v1000, %v1002
        %vm1006 = vc.u32 %v1000, %v1002
        %v1007 = vadd.s32 %v1003, 1
        %v1008 = vsel %vm1006, %v1007, %v1003
        %v1009 = vadd.s32 %v1004, %v1008
        %v1010 = vadd.s32 %v1009, 536870912
        %v1011 = vshrl.u32 %v1010, 30
        %v1012 = vshll.u32 %v1011, 30
        %v1013 = vsub.s32 %v1009, %v1012
        %vm1014 = vcmp.lt.s32.totalorder %v1013, 0
        %v1015 = vsub.s32 0, %v1013
        %v1016 = vsel %vm1014, %v1015, %v1013
        %v1017 = vclz %v1016
        %v1018 = vsub.s32 %v1017, 2
        %vm1019 = vcmp.gt.s32.totalorder 0, %v1018
        %v1020 = vsel %vm1019, 0, %v1018
        %v1021 = vsub.s32 32, %v1020
        %v1022 = vshll.u32 %v1013, %v1020
        %v1023 = vshrl.u32 %v1005, %v1021
        %v1024 = vor.u32 %v1022, %v1023
        %v1025 = vsub.s32 4294967266, %v1020
        %v1026 = vadd.s32 %v1025, 127
        %v1027 = vshll.u32 %v1026, 23
        %v1028 = vor.u32 4788187, %v1027
        %v1029 = vand.u32 2147483647, %v1028
        %v1031 = vcvt.s32.f32 %v1024
        %v1032 = vmul.f32 %v1031, %v1029
        %v1033 = vxor.u32 %v1032, 2147483648
        %v1034 = vsel %vm951, %v1033, %v1032
        %v1035 = vsub.s32 4, %v1011
        %v1036 = vsel %vm951, %v1035, %v1011
        %v1037 = vsel %vm950, %v739, %v1034
        %v1038 = vsel %vm950, 0, %v1036
        %v1039 = vcosq.f32.pop %v1037
        %v1040 = vsinq.f32.pop %v1037
        %vm1041 = vweird.f32 %v739
        %v1042 = vadd.s32 %v1038, 3
        %v1043 = vand.u32 %v1042, 3
        %vm1044 = vcmp.lt.s32.totalorder %v1043, 2
        %vm1045 = vcmp.eq.s32.totalorder %v1043, 0
        %v1046 = vxor.u32 %v1040, 2147483648
        %v1047 = vsel %vm1045, %v1039, %v1046
        %vm1048 = vcmp.eq.s32.totalorder %v1043, 2
        %v1049 = vxor.u32 %v1039, 2147483648
        %v1050 = vsel %vm1048, %v1049, %v1040
        %v1051 = vsel %vm1044, %v1047, %v1050
        %v1052 = vsel %vm1041, nan, %v1051
        %v1053 = vand.u32 2147483647, %v740
        %vm1054 = vcmp.le.f32.partialorder %v1053, 0.7853982
        %vm1055 = vcmp.lt.s32.totalorder %v740, 0
        %v1056 = vand.u32 %v740, 2139095040
        %v1057 = vshrl.u32 %v1056, 23
        %v1058 = vsub.s32 %v1057, 127
        %v1059 = vand.u32 2147483647, %v740
        %v1060 = vand.u32 %v1059, 8388607
        %v1061 = vor.u32 %v1060, 8388608
        %v1062 = vsub.s32 0, %v1061
        %v1063 = vadd.s32 %v1058, 1
        %vm1064 = vcmp.gt.s32.totalorder %v1063, 0
        %v1065 = vsel %vm1064, %v1063, 0
        %v1066 = vshrl.u32 %v1065, 5
        %v1067 = vand.u32 %v1065, 31
        %v1068 = vsub.s32 32, %v1067
        %v1069 = vshrl.u32 683565275, %v1068
        %v1070 = vshll.u32 683565275, %v1067
        %v1071 = vshrl.u32 2475754826, %v1068
        %v1072 = vor.u32 %v1070, %v1071
        %v1073 = vshll.u32 2475754826, %v1067
        %v1074 = vshrl.u32 2131351028, %v1068
        %v1075 = vor.u32 %v1073, %v1074
        %v1076 = vshll.u32 2131351028, %v1067
        %v1077 = vshrl.u32 2102212464, %v1068
        %v1078 = vor.u32 %v1076, %v1077
        %v1079 = vshll.u32 2102212464, %v1067
        %v1080 = vshrl.u32 920167782, %v1068
        %v1081 = vor.u32 %v1079, %v1080
        %v1082 = vshll.u32 920167782, %v1067
        %v1083 = vshrl.u32 1326507024, %v1068
        %v1084 = vor.u32 %v1082, %v1083
        %vm1085 = vcmp.lt.s32.totalorder %v1066, 1
        %vm1086 = vcmp.lt.s32.totalorder %v1066, 2
        %vm1087 = vcmp.lt.s32.totalorder %v1066, 3
        %vm1088 = vcmp.lt.s32.totalorder %v1066, 4
        %v1089 = vsel %vm1085, %v1069, %v1072
        %v1090 = vsel %vm1088, %v1078, 2102212464
        %v1091 = vsel %vm1087, %v1075, %v1090
        %v1092 = vsel %vm1086, %v1089, %v1091
        %v1093 = vsel %vm1085, %v1072, %v1075
        %v1094 = vsel %vm1088, %v1081, 920167782
        %v1095 = vsel %vm1087, %v1078, %v1094
        %v1096 = vsel %vm1086, %v1093, %v1095
        %v1097 = vsel %vm1085, %v1075, %v1078
        %v1098 = vsel %vm1088, %v1084, 1326507024
        %v1099 = vsel %vm1087, %v1081, %v1098
        %v1100 = vsel %vm1086, %v1097, %v1099
        %v1101 = vshll.u32 %v1061, 8
        %v1102 = vmul.u32.u64.compose %v1101, %v1100
        %v1103 = vextract.low.u32 %v1102
        %v1104 = vextract.high.u32 %v1102
        %v1105 = vmul.u32.u64.compose %v1101, %v1096
        %v1106 = vextract.low.u32 %v1105
        %v1107 = vextract.high.u32 %v1105
        %v1108 = vmul.u32 %v1101, %v1092
        %v1109 = vadd.s32 %v1104, %v1106
        %vm1110 = vc.u32 %v1104, %v1106
        %v1111 = vadd.s32 %v1107, 1
        %v1112 = vsel %vm1110, %v1111, %v1107
        %v1113 = vadd.s32 %v1108, %v1112
        %v1114 = vadd.s32 %v1113, 536870912
        %v1115 = vshrl.u32 %v1114, 30
        %v1116 = vshll.u32 %v1115, 30
        %v1117 = vsub.s32 %v1113, %v1116
        %vm1118 = vcmp.lt.s32.totalorder %v1117, 0
        %v1119 = vsub.s32 0, %v1117
        %v1120 = vsel %vm1118, %v1119, %v1117
        %v1121 = vclz %v1120
        %v1122 = vsub.s32 %v1121, 2
        %vm1123 = vcmp.gt.s32.totalorder 0, %v1122
        %v1124 = vsel %vm1123, 0, %v1122
        %v1125 = vsub.s32 32, %v1124
        %v1126 = vshll.u32 %v1117, %v1124
        %v1127 = vshrl.u32 %v1109, %v1125
        %v1128 = vor.u32 %v1126, %v1127
        %v1129 = vsub.s32 4294967266, %v1124
        %v1130 = vadd.s32 %v1129, 127
        %v1131 = vshll.u32 %v1130, 23
        %v1132 = vor.u32 4788187, %v1131
        %v1133 = vand.u32 2147483647, %v1132
        %v1135 = vcvt.s32.f32 %v1128
        %v1136 = vmul.f32 %v1135, %v1133
        %v1137 = vxor.u32 %v1136, 2147483648
        %v1138 = vsel %vm1055, %v1137, %v1136
        %v1139 = vsub.s32 4, %v1115
        %v1140 = vsel %vm1055, %v1139, %v1115
        %v1141 = vsel %vm1054, %v740, %v1138
        %v1142 = vsel %vm1054, 0, %v1140
        %v1143 = vcosq.f32.pop %v1141
        %v1144 = vsinq.f32.pop %v1141
        %vm1145 = vweird.f32 %v740
        %v1146 = vadd.s32 %v1142, 3
        %v1147 = vand.u32 %v1146, 3
        %vm1148 = vcmp.lt.s32.totalorder %v1147, 2
        %vm1149 = vcmp.eq.s32.totalorder %v1147, 0
        %v1150 = vxor.u32 %v1144, 2147483648
        %v1151 = vsel %vm1149, %v1143, %v1150
        %vm1152 = vcmp.eq.s32.totalorder %v1147, 2
        %v1153 = vxor.u32 %v1143, 2147483648
        %v1154 = vsel %vm1152, %v1153, %v1144
        %v1155 = vsel %vm1148, %v1151, %v1154
        %v1156 = vsel %vm1145, nan, %v1155
        %1157 = vst [vmem:[%s237 + $0x20] sm:$0xff] %v844
        %1158 = vst [vmem:[%s237 + $0x28] sm:$0xff] %v948
        %1159 = vst [vmem:[%s237 + $0x30] sm:$0xff] %v1052
        %1160 = vst [vmem:[%s237 + $0x38] sm:$0xff] %v1156
        %s1161 = sand.u32 %s138, 1
        %s1162 = scalar_lea.sflag [#allocation3], %s1161
        %s1163 = sand.u32 %s138, 1
        %s1164 = smul.addr %s1163, 64
        %s1165 = scalar_lea.vmem [#allocation2], %s1164
        // Predicated region
        $region37: #{tpu_custom_call.1} parent=35 // pred_check
          %p1166 = pneg %p148
        $region38: #{tpu_custom_call.1} parent=35 // pred_check_branch
          %1168 = sbr.rel (%p1166) target = $region40
        $region39: #{tpu_custom_call.1} parent=35 // pred_region
          %s1169 = smul.u32 2, %s23
          %s1171 = ssub.s32 1024, 1024
          %1172 = vsyncadd %s1162, %s1171
          %s1173 = smul.addr %s22, 8
          %s1174 = sadd.s32 %s1169, %s1173
          %s1175 = smul.addr %s1174, 128
          %s1176 = scalar_lea.hbm %s4, %s1175
          %s1177 = sshll.u32 %s1165, 4
          %s1178 = int_to_ptr.vmem [resolvable:$true] %s1177
          %1183 = dma.vmem_to_hbm [thread:$0]  %s1178, 1024, %s1176, %s1162, 256, 256, 16
        $region40: #{tpu_custom_call.1} parent=35 // pred_fallthru
          _
      $region36: #{tpu_custom_call.1} parent=5 // pred_fallthru
        _
      %p1184 = scmp.le.s32.totalorder 2, %s13
      // Predicated region
      $region41: #{tpu_custom_call.1} parent=5 // pred_check
        %p1185 = pneg %p1184
      $region42: #{tpu_custom_call.1} parent=5 // pred_check_branch
        %1187 = sbr.rel (%p1185) target = $region44
      $region43: #{tpu_custom_call.1} parent=5 // pred_region
        %s1188 = ssub.s32 %s13, 2
        // Predicated region
        $region45: #{tpu_custom_call.1} parent=43 // pred_check
          %p1189 = pneg %p154
        $region46: #{tpu_custom_call.1} parent=43 // pred_check_branch
          %1191 = sbr.rel (%p1189) target = $region48
        $region47: #{tpu_custom_call.1} parent=43 // pred_region
          %s1192 = sand.u32 %s139, 1
          %s1193 = scalar_lea.sflag [#allocation3], %s1192
          %s1194 = sand.u32 %s139, 1
          %s1195 = smul.addr %s1194, 64
          %s1196 = scalar_lea.vmem [#allocation2], %s1195
          %1197 = dma.done %s1193, 1024
        $region48: #{tpu_custom_call.1} parent=43 // pred_fallthru
          _
      $region44: #{tpu_custom_call.1} parent=5 // pred_fallthru
        _
    $region6: #{tpu_custom_call.1} parent=1 // loop_footer
      %s17 = sadd.s32 1, %s13
    $region7: #{tpu_custom_call.1} parent=1 // loop_footer_branch
      %12 = sbr.rel target = $region3
    $region8: #{tpu_custom_call.1} parent=1 // loop_exit
      _
    %1198 = vsyncpa [#allocation3], 1
    %s1199 = scalar_lea.sflag [#allocation3], 1
    %1200 = vsyncpa %s1199, 1

</llo_original>
